<compile_context>
chip_gen: v5e
topology: v5e:2x2
jax: 0.10.0
libtpu: 0.0.40
codegen_flags: <defaults>
</compile_context>

<pallas_src>
import functools

import numpy as np

import jax
import jax.numpy as jnp
from jax.experimental import pallas as pl
from jax.experimental.pallas import tpu as pltpu

LANE = 128


def _rup(n, m=LANE):
    return ((n + m - 1) // m) * m


# ----------------------------------------------------------------------------
# Fused kernel (structure closed over a static "plan" of slab offsets)
# ----------------------------------------------------------------------------
def make_fused_kernel(plan):
    def kernel(x_ref, cond_ref, eps_ref, w_ref, b_ref, out_ref):
        def wmat(e):                        # static slice of the bf16 weight slab
            off, rows, cols = e[0], e[1], e[2]
            return w_ref[off:off + rows, :cols]

        def bvec(e):                        # static slice of the f32 bias slab
            return b_ref[e[3]:e[3] + 1, :e[4]]

        def mm(a, e):                       # bf16 MXU matmul, f32 accumulation
            return jnp.dot(a.astype(jnp.bfloat16), wmat(e),
                           preferred_element_type=jnp.float32)

        def dense_relu(a, e):
            return jnp.maximum(mm(a, e) + bvec(e), 0.0)

        # ----- Encoder MLP (activations stay in VMEM/vregs) -----
        h = x_ref[...]
        for e in plan["enc"]:
            h = dense_relu(h, e)
        enc_h = h

        # ----- merged (mu | logvar) head, tile-aligned split, reparameterize --
        e = plan["ml"]
        ml = mm(enc_h, e) + bvec(e)                     # (TB, 256)
        mu = ml[:, :LANE]                               # lanes [0,128)
        logvar = ml[:, LANE:]                           # lanes [128,256)
        z = mu + eps_ref[...] * jnp.exp(0.5 * logvar)   # (TB, 128), pads stay 0

        # ----- conv stack as dense banded matmuls on lane-dense activations ---
        c = cond_ref[...]
        for e in plan["conv"]:
            c = dense_relu(c, e)

        # ----- decoder MLP; first layer consumes [z | feat] without a concat --
        ez, ef = plan["dec0_z"], plan["dec0_f"]
        h = jnp.maximum(mm(z, ez) + mm(c, ef) + bvec(ez), 0.0)
        for e in plan["dec_rest"]:
            h = dense_relu(h, e)

        # ----- merged lane-dense output [theta | data | mu | logvar | 0-pad] --
        ed, ee = plan["out_dec"], plan["out_enc"]
        out_ref[...] = mm(h, ed) + mm(enc_h, ee) + bvec(ed)

    return kernel


# ----------------------------------------------------------------------------
# Forward wrapper (single pallas_call, batched "parallel" grid)
# ----------------------------------------------------------------------------
def cnn_cvae_forward(w_slab, b_slab, x, cond, eps, *, plan, input_dim,
                     latent_dim, conditional_dim, tile_batch=128):
    # tile_batch: ~128 rows/step suits v5e's 4x128^2 MXU; 256 on v6e/v7x.
    B = x.shape[0]
    C, L = conditional_dim
    din_pad, cond_pad, out_pad = plan["din_pad"], plan["cond_pad"], plan["out_pad"]

    TB = min(tile_batch, _rup(B, 8))
    B_pad = _rup(B, TB)

    # pad batch to the tile and feature dims to lane-dense widths (zeros)
    x_p = jnp.zeros((B_pad, din_pad), jnp.float32).at[:B, :input_dim].set(x)
    cond_a = jnp.zeros((B_pad, cond_pad), jnp.float32
                       ).at[:B, :C * L].set(cond.reshape(B, C * L))
    eps_p = jnp.zeros((B_pad, LANE), jnp.float32).at[:B, :latent_dim].set(eps)

    grid = (B_pad // TB,)

    flops = 2 * B_pad * plan["mac"]
    bytes_accessed = int(4 * (x_p.size + cond_a.size + eps_p.size)
                         + 2 * w_slab.size + 4 * b_slab.size
                         + 4 * B_pad * out_pad)
    cost = pl.CostEstimate(flops=flops, transcendentals=B_pad * LANE,
                           bytes_accessed=bytes_accessed)

    out = pl.pallas_call(
        make_fused_kernel(plan),
        out_shape=jax.ShapeDtypeStruct((B_pad, out_pad), jnp.float32),
        grid=grid,
        in_specs=[
            pl.BlockSpec((TB, din_pad), lambda i: (i, 0)),       # x (row-blocked)
            pl.BlockSpec((TB, cond_pad), lambda i: (i, 0)),      # cond
            pl.BlockSpec((TB, LANE), lambda i: (i, 0)),          # eps
            pl.BlockSpec(w_slab.shape, lambda i: (0, 0)),        # weight slab (resident)
            pl.BlockSpec(b_slab.shape, lambda i: (0, 0)),        # bias slab (resident)
        ],
        out_specs=pl.BlockSpec((TB, out_pad), lambda i: (i, 0)),
        compiler_params=pltpu.CompilerParams(
            dimension_semantics=("parallel",)),
        cost_estimate=cost,
    )(x_p, cond_a, eps_p, w_slab, b_slab)

    heads = input_dim + C * L
    recon_theta = out[:B, :input_dim]
    recon_data = out[:B, input_dim:heads].reshape(B, C, L)
    mu = out[:B, heads:heads + latent_dim]
    logvar = out[:B, heads + latent_dim:heads + 2 * latent_dim]
    return recon_theta, recon_data, mu, logvar


# ----------------------------------------------------------------------------
# Parameter construction (raw, PyTorch-layout)
# ----------------------------------------------------------------------------
def _dense_params(key, fan_in, fan_out):
    kw, kb = jax.random.split(key)
    w = 0.1 * jax.random.normal(kw, (fan_in, fan_out), dtype=jnp.float32)
    b = 0.01 * jax.random.normal(kb, (fan_out,), dtype=jnp.float32)
    return w, b


def init_cnn_cvae_params(key, input_dim, latent_dim, conditional_dim,
                         encoder_hidden_dims, conv_output_channels,
                         output_linear_layer, kernel_sizes):
    params = {}
    keys = jax.random.split(key, 64)
    ki = iter(range(64))

    enc = []
    prev = input_dim
    for h in encoder_hidden_dims:
        enc.append(_dense_params(keys[next(ki)], prev, h))
        prev = h
    params["enc_layers"] = enc
    params["fc_mu"] = _dense_params(keys[next(ki)], prev, latent_dim)
    params["fc_logvar"] = _dense_params(keys[next(ki)], prev, latent_dim)

    C_cond, L_cond = conditional_dim
    convs = []
    c_prev = C_cond
    for c_out, k in zip(conv_output_channels, kernel_sizes):
        kw, kb = jax.random.split(keys[next(ki)])
        w = 0.1 * jax.random.normal(kw, (c_out, c_prev, k), dtype=jnp.float32)
        b = 0.01 * jax.random.normal(kb, (c_out,), dtype=jnp.float32)
        convs.append((w, b))
        c_prev = c_out
    params["convs"] = convs

    feat_dim = c_prev * L_cond
    prev = latent_dim + feat_dim
    dec = []
    for h in output_linear_layer:
        dec.append(_dense_params(keys[next(ki)], prev, h))
        prev = h
    params["dec_layers"] = dec
    params["head_theta"] = _dense_params(keys[next(ki)], prev, input_dim)
    params["head_data"] = _dense_params(keys[next(ki)], prev, C_cond * L_cond)
    return params


# ----------------------------------------------------------------------------
# Pack parameters into two slabs (bf16 weights + f32 biases) and build the plan
# ----------------------------------------------------------------------------
def _conv1d_to_dense(w_oik, L):
    """Fold a PyTorch Conv1d (stride=1, padding=K//2) weight into a dense
    (C_in*L, C_out*L) matrix acting on c-major flattened (B, C*L) activations."""
    C_out, C_in, K = w_oik.shape
    pad = K // 2
    dense = np.zeros((C_in * L, C_out * L), np.float32)
    lo = np.arange(L)
    for co in range(C_out):
        for ci in range(C_in):
            for k in range(K):
                li = lo + k - pad
                m = (li >= 0) & (li < L)
                dense[ci * L + li[m], co * L + lo[m]] = w_oik[co, ci, k]
    return dense


def pack_params(raw, input_dim, latent_dim, conditional_dim):
    assert latent_dim <= LANE
    C, L = conditional_dim
    heads_dim = input_dim + C * L
    out_pad = _rup(heads_dim + 2 * latent_dim)

    mats, brows = [], []

    def add(W, b=None):
        fi, fo = W.shape
        rp, cp = _rup(fi), _rup(fo)
        M = np.zeros((rp, cp), np.float32)
        M[:fi, :fo] = W
        mats.append(M)
        if b is None:
            bi, bc = -1, 0
        else:
            bv = np.zeros((cp,), np.float32)
            bv[:fo] = b
            brows.append(bv)
            bi, bc = len(brows) - 1, cp
        return [len(mats) - 1, rp, cp, bi, bc]

    plan = {}

    # encoder MLP
    plan["enc"] = [add(np.asarray(W, np.float32), np.asarray(b, np.float32))
                   for (W, b) in raw["enc_layers"]]

    # merged (mu|logvar) head: mu -> cols [0,latent), logvar -> [128,128+latent)
    W_mu, b_mu = [np.asarray(a, np.float32) for a in raw["fc_mu"]]
    W_lv, b_lv = [np.asarray(a, np.float32) for a in raw["fc_logvar"]]
    H_enc = W_mu.shape[0]
    Wml = np.zeros((H_enc, 2 * LANE), np.float32)
    Wml[:, :latent_dim] = W_mu
    Wml[:, LANE:LANE + latent_dim] = W_lv
    bml = np.zeros((2 * LANE,), np.float32)
    bml[:latent_dim] = b_mu
    bml[LANE:LANE + latent_dim] = b_lv
    plan["ml"] = add(Wml, bml)

    # conv layers -> dense banded matrices (+ channel-expanded biases)
    plan["conv"] = []
    for (w_oik, b_o) in raw["convs"]:
        dense = _conv1d_to_dense(np.asarray(w_oik, np.float32), L)
        b_exp = np.repeat(np.asarray(b_o, np.float32), L)
        plan["conv"].append(add(dense, b_exp))

    # decoder first layer split into z-part / feat-part (removes the concat)
    W1, b1 = [np.asarray(a, np.float32) for a in raw["dec_layers"][0]]
    plan["dec0_z"] = add(W1[:latent_dim, :], b1)
    plan["dec0_f"] = add(W1[latent_dim:, :])
    plan["dec_rest"] = [add(np.asarray(W, np.float32), np.asarray(b, np.float32))
                        for (W, b) in raw["dec_layers"][1:]]

    # merged lane-dense output head: columns [theta | data | mu | logvar | 0]
    W_th, b_th = [np.asarray(a, np.float32) for a in raw["head_theta"]]
    W_da, b_da = [np.asarray(a, np.float32) for a in raw["head_data"]]
    H_dec = W_th.shape[0]
    W_out_dec = np.zeros((H_dec, out_pad), np.float32)
    W_out_dec[:, :input_dim] = W_th
    W_out_dec[:, input_dim:heads_dim] = W_da
    W_out_enc = np.zeros((H_enc, out_pad), np.float32)
    W_out_enc[:, heads_dim:heads_dim + latent_dim] = W_mu
    W_out_enc[:, heads_dim + latent_dim:heads_dim + 2 * latent_dim] = W_lv
    b_out = np.zeros((out_pad,), np.float32)
    b_out[:input_dim] = b_th
    b_out[input_dim:heads_dim] = b_da
    b_out[heads_dim:heads_dim + latent_dim] = b_mu
    b_out[heads_dim + latent_dim:heads_dim + 2 * latent_dim] = b_lv
    plan["out_dec"] = add(W_out_dec, b_out)
    plan["out_enc"] = add(W_out_enc)

    # ---- assemble the two slabs ----
    slab_w = max(M.shape[1] for M in mats)
    offs = np.cumsum([0] + [M.shape[0] for M in mats])
    w_slab = np.zeros((int(offs[-1]), slab_w), np.float32)
    for M, off in zip(mats, offs[:-1]):
        w_slab[off:off + M.shape[0], :M.shape[1]] = M

    nb = max(len(brows), 1)
    b_slab = np.zeros((_rup(nb, 8), slab_w), np.float32)
    for i, bv in enumerate(brows):
        b_slab[i, :bv.shape[0]] = bv

    def finalize(e):
        idx, rp, cp, bi, bc = e
        return (int(offs[idx]), rp, cp, bi, bc)

    for k in ("enc", "conv", "dec_rest"):
        plan[k] = [finalize(e) for e in plan[k]]
    for k in ("ml", "dec0_z", "dec0_f", "out_dec", "out_enc"):
        plan[k] = finalize(plan[k])

    all_entries = (plan["enc"] + plan["conv"] + plan["dec_rest"]
                   + [plan["ml"], plan["dec0_z"], plan["dec0_f"],
                      plan["out_dec"], plan["out_enc"]])
    plan["mac"] = int(sum(e[1] * e[2] for e in all_entries))
    plan["din_pad"] = _rup(input_dim)
    plan["cond_pad"] = _rup(C * L)
    plan["out_pad"] = out_pad

    w_slab_j = jnp.asarray(w_slab, jnp.bfloat16)   # bf16 MXU path, half the bytes
    b_slab_j = jnp.asarray(b_slab, jnp.float32)
    return plan, w_slab_j, b_slab_j


# ----------------------------------------------------------------------------
# Pure-numpy reference (mirrors the PyTorch module forward; weights rounded to
# bf16 to match the kernel's MXU input dtype — accumulation/elementwise in f32)
# ----------------------------------------------------------------------------
def _bf16_round(a):
    return np.asarray(jnp.asarray(np.asarray(a, np.float32), jnp.bfloat16
                                  ).astype(jnp.float32))


def _conv1d_same_np(x, w, b):
    B, Cin, L = x.shape
    Cout, _, K = w.shape
    pad = K // 2
    xp = np.zeros((B, Cin, L + 2 * pad), np.float32)
    xp[:, :, pad:pad + L] = x
    y = np.zeros((B, Cout, L), np.float32)
    for k in range(K):
        y += np.einsum('oc,bcl->bol', w[:, :, k], xp[:, :, k:k + L])
    return y + b[None, :, None]


def reference_forward(raw, x, cond, eps, conditional_dim):
    x = np.asarray(x, np.float32)
    cond = np.asarray(cond, np.float32)
    eps = np.asarray(eps, np.float32)

    def lin(h, Wb):
        W, b = Wb
        return h @ _bf16_round(W) + np.asarray(b, np.float32)

    h = x
    for Wb in raw["enc_layers"]:
        h = np.maximum(lin(h, Wb), 0.0)
    mu = lin(h, raw["fc_mu"])
    logvar = lin(h, raw["fc_logvar"])
    z = mu + eps * np.exp(0.5 * logvar)

    c = cond
    for w_oik, b_o in raw["convs"]:
        c = np.maximum(_conv1d_same_np(c, _bf16_round(w_oik),
                                       np.asarray(b_o, np.float32)), 0.0)
    B = c.shape[0]
    feat = c.reshape(B, -1)
    h = np.concatenate([z, feat], axis=1)
    for Wb in raw["dec_layers"]:
        h = np.maximum(lin(h, Wb), 0.0)
    t = lin(h, raw["head_theta"])
    C, L = conditional_dim
    d = lin(h, raw["head_data"]).reshape(B, C, L)
    return t, d, mu, logvar


# ----------------------------------------------------------------------------
if __name__ == "__main__":
    batch = 2
    input_dim = 8                  # theta dimensionality
    latent_dim = 4
    conditional_dim = (4, 16)      # (channels, length) of conditional data
    encoder_hidden_dims = [32, 32]
    conv_output_channels = [8, 8]
    kernel_sizes = [3, 3]
    output_linear_layer = [32]

    root = jax.random.PRNGKey(0)
    (k_params, k_x, k_cond, k_eps,
     k_x2, k_cond2, k_eps2) = jax.random.split(root, 7)

    raw_params = init_cnn_cvae_params(
        k_params, input_dim, latent_dim, conditional_dim,
        encoder_hidden_dims, conv_output_channels,
        output_linear_layer, kernel_sizes)
    plan, w_slab, b_slab = pack_params(raw_params, input_dim, latent_dim,
                                       conditional_dim)

    fwd = jax.jit(functools.partial(
        cnn_cvae_forward, plan=plan, input_dim=input_dim,
        latent_dim=latent_dim, conditional_dim=conditional_dim,
        tile_batch=128))

    def check(B, kx, kc, ke):
        x = jax.random.normal(kx, (B, input_dim), dtype=jnp.float32)
        cond = jax.random.normal(kc, (B,) + conditional_dim, dtype=jnp.float32)
        eps = jax.random.normal(ke, (B, latent_dim), dtype=jnp.float32)

        recon_x1, recon_x2, mu, logvar = fwd(w_slab, b_slab, x, cond, eps)
        jax.block_until_ready((recon_x1, recon_x2, mu, logvar))

        C, L = conditional_dim
        assert recon_x1.shape == (B, input_dim)
        assert recon_x2.shape == (B, C, L)
        assert mu.shape == (B, latent_dim)
        assert logvar.shape == (B, latent_dim)

        r1, r2, rmu, rlv = reference_forward(raw_params, x, cond, eps,
                                             conditional_dim)
        for got, ref in ((recon_x1, r1), (recon_x2, r2), (mu, rmu), (logvar, rlv)):
            assert np.allclose(np.asarray(got), ref, rtol=2e-2, atol=2e-2), \
                f"mismatch at B={B}"

    # small shapes (grid of 1 tile, padded batch)
    check(batch, k_x, k_cond, k_eps)
    # larger batch: exercises a multi-step "parallel" grid with tail padding
    check(300, k_x2, k_cond2, k_eps2)

    print("KERNEL_OK")
</pallas_src>

<mosaic_0001>
module attributes {stable_mosaic.version = 11 : i64} {
  func.func @kernel(%arg0: i32, %arg1: memref<8x128xf32, #tpu.memory_space<vmem>>, %arg2: memref<8x128xf32, #tpu.memory_space<vmem>>, %arg3: memref<8x128xf32, #tpu.memory_space<vmem>>, %arg4: memref<1152x256xbf16, #tpu.memory_space<vmem>>, %arg5: memref<8x256xf32, #tpu.memory_space<vmem>>, %arg6: memref<8x128xf32, #tpu.memory_space<vmem>>) attributes {dimension_semantics = [#tpu.dimension_semantics<parallel>], iteration_bounds = array<i64: 1>, scalar_prefetch = 0 : i64, scratch_operands = 0 : i64, tpu.core_type = #tpu.core_type<tc>, window_params = [{transform_indices = @transform_0, window_bounds = array<i64: 8, 128>}, {transform_indices = @transform_1, window_bounds = array<i64: 8, 128>}, {transform_indices = @transform_2, window_bounds = array<i64: 8, 128>}, {pipeline_mode = #tpu.pipeline_mode<synchronous>, transform_indices = @transform_3, window_bounds = array<i64: 1152, 256>}, {pipeline_mode = #tpu.pipeline_mode<synchronous>, transform_indices = @transform_4, window_bounds = array<i64: 8, 256>}, {transform_indices = @transform_5, window_bounds = array<i64: 8, 128>}]} {
    %c0 = arith.constant 0 : index
    %c0_0 = arith.constant 0 : index
    %0 = vector.load %arg1[%c0, %c0_0] : memref<8x128xf32, #tpu.memory_space<vmem>>, vector<8x128xf32>
    %1 = arith.truncf %0 : vector<8x128xf32> to vector<8x128xbf16>
    %c0_1 = arith.constant 0 : index
    %c0_2 = arith.constant 0 : index
    %2 = vector.load %arg4[%c0_1, %c0_2] : memref<1152x256xbf16, #tpu.memory_space<vmem>>, vector<128x128xbf16>
    %cst = arith.constant dense<0.000000e+00> : vector<8x128xf32>
    %3 = tpu.matmul %1, %2, %cst {dimension_numbers = #tpu.dot_dimension_numbers<[1], [0], [0], [1], [0, 0, 1, 1], [], []>} : vector<8x128xbf16>, vector<128x128xbf16>, vector<8x128xf32> -> vector<8x128xf32>
    %c0_3 = arith.constant 0 : index
    %c0_4 = arith.constant 0 : index
    %4 = vector.load %arg5[%c0_3, %c0_4] : memref<8x256xf32, #tpu.memory_space<vmem>>, vector<1x128xf32>
    %5 = vector.broadcast %4 : vector<1x128xf32> to vector<8x128xf32>
    %6 = arith.addf %3, %5 : vector<8x128xf32>
    %cst_5 = arith.constant 0.000000e+00 : f32
    %7 = vector.broadcast %cst_5 : f32 to vector<8x128xf32>
    %8 = arith.maximumf %6, %7 : vector<8x128xf32>
    %9 = arith.truncf %8 : vector<8x128xf32> to vector<8x128xbf16>
    %c128 = arith.constant 128 : index
    %c0_6 = arith.constant 0 : index
    %10 = vector.load %arg4[%c128, %c0_6] : memref<1152x256xbf16, #tpu.memory_space<vmem>>, vector<128x128xbf16>
    %cst_7 = arith.constant dense<0.000000e+00> : vector<8x128xf32>
    %11 = tpu.matmul %9, %10, %cst_7 {dimension_numbers = #tpu.dot_dimension_numbers<[1], [0], [0], [1], [0, 0, 1, 1], [], []>} : vector<8x128xbf16>, vector<128x128xbf16>, vector<8x128xf32> -> vector<8x128xf32>
    %c1 = arith.constant 1 : index
    %c0_8 = arith.constant 0 : index
    %12 = vector.load %arg5[%c1, %c0_8] : memref<8x256xf32, #tpu.memory_space<vmem>>, vector<1x128xf32>
    %13 = vector.broadcast %12 : vector<1x128xf32> to vector<8x128xf32>
    %14 = arith.addf %11, %13 : vector<8x128xf32>
    %cst_9 = arith.constant 0.000000e+00 : f32
    %15 = vector.broadcast %cst_9 : f32 to vector<8x128xf32>
    %16 = arith.maximumf %14, %15 : vector<8x128xf32>
    %17 = arith.truncf %16 : vector<8x128xf32> to vector<8x128xbf16>
    %c256 = arith.constant 256 : index
    %c0_10 = arith.constant 0 : index
    %18 = vector.load %arg4[%c256, %c0_10] : memref<1152x256xbf16, #tpu.memory_space<vmem>>, vector<128x256xbf16>
    %cst_11 = arith.constant dense<0.000000e+00> : vector<8x256xf32>
    %19 = tpu.matmul %17, %18, %cst_11 {dimension_numbers = #tpu.dot_dimension_numbers<[1], [0], [0], [1], [0, 0, 1, 1], [], []>} : vector<8x128xbf16>, vector<128x256xbf16>, vector<8x256xf32> -> vector<8x256xf32>
    %c2 = arith.constant 2 : index
    %c0_12 = arith.constant 0 : index
    %20 = vector.load %arg5[%c2, %c0_12] : memref<8x256xf32, #tpu.memory_space<vmem>>, vector<1x256xf32>
    %21 = vector.broadcast %20 : vector<1x256xf32> to vector<8x256xf32>
    %22 = arith.addf %19, %21 : vector<8x256xf32>
    %23 = vector.extract_strided_slice %22 {offsets = [0, 0], sizes = [8, 128], strides = [1, 1]} : vector<8x256xf32> to vector<8x128xf32>
    %24 = vector.extract_strided_slice %22 {offsets = [0, 128], sizes = [8, 128], strides = [1, 1]} : vector<8x256xf32> to vector<8x128xf32>
    %c0_13 = arith.constant 0 : index
    %c0_14 = arith.constant 0 : index
    %25 = vector.load %arg3[%c0_13, %c0_14] : memref<8x128xf32, #tpu.memory_space<vmem>>, vector<8x128xf32>
    %cst_15 = arith.constant 5.000000e-01 : f32
    %26 = vector.broadcast %cst_15 : f32 to vector<8x128xf32>
    %27 = arith.mulf %26, %24 : vector<8x128xf32>
    %28 = math.exp %27 : vector<8x128xf32>
    %29 = arith.mulf %25, %28 : vector<8x128xf32>
    %30 = arith.addf %23, %29 : vector<8x128xf32>
    %c0_16 = arith.constant 0 : index
    %c0_17 = arith.constant 0 : index
    %31 = vector.load %arg2[%c0_16, %c0_17] : memref<8x128xf32, #tpu.memory_space<vmem>>, vector<8x128xf32>
    %32 = arith.truncf %31 : vector<8x128xf32> to vector<8x128xbf16>
    %c384 = arith.constant 384 : index
    %c0_18 = arith.constant 0 : index
    %33 = vector.load %arg4[%c384, %c0_18] : memref<1152x256xbf16, #tpu.memory_space<vmem>>, vector<128x128xbf16>
    %cst_19 = arith.constant dense<0.000000e+00> : vector<8x128xf32>
    %34 = tpu.matmul %32, %33, %cst_19 {dimension_numbers = #tpu.dot_dimension_numbers<[1], [0], [0], [1], [0, 0, 1, 1], [], []>} : vector<8x128xbf16>, vector<128x128xbf16>, vector<8x128xf32> -> vector<8x128xf32>
    %c3 = arith.constant 3 : index
    %c0_20 = arith.constant 0 : index
    %35 = vector.load %arg5[%c3, %c0_20] : memref<8x256xf32, #tpu.memory_space<vmem>>, vector<1x128xf32>
    %36 = vector.broadcast %35 : vector<1x128xf32> to vector<8x128xf32>
    %37 = arith.addf %34, %36 : vector<8x128xf32>
    %cst_21 = arith.constant 0.000000e+00 : f32
    %38 = vector.broadcast %cst_21 : f32 to vector<8x128xf32>
    %39 = arith.maximumf %37, %38 : vector<8x128xf32>
    %40 = arith.truncf %39 : vector<8x128xf32> to vector<8x128xbf16>
    %c512 = arith.constant 512 : index
    %c0_22 = arith.constant 0 : index
    %41 = vector.load %arg4[%c512, %c0_22] : memref<1152x256xbf16, #tpu.memory_space<vmem>>, vector<128x128xbf16>
    %cst_23 = arith.constant dense<0.000000e+00> : vector<8x128xf32>
    %42 = tpu.matmul %40, %41, %cst_23 {dimension_numbers = #tpu.dot_dimension_numbers<[1], [0], [0], [1], [0, 0, 1, 1], [], []>} : vector<8x128xbf16>, vector<128x128xbf16>, vector<8x128xf32> -> vector<8x128xf32>
    %c4 = arith.constant 4 : index
    %c0_24 = arith.constant 0 : index
    %43 = vector.load %arg5[%c4, %c0_24] : memref<8x256xf32, #tpu.memory_space<vmem>>, vector<1x128xf32>
    %44 = vector.broadcast %43 : vector<1x128xf32> to vector<8x128xf32>
    %45 = arith.addf %42, %44 : vector<8x128xf32>
    %cst_25 = arith.constant 0.000000e+00 : f32
    %46 = vector.broadcast %cst_25 : f32 to vector<8x128xf32>
    %47 = arith.maximumf %45, %46 : vector<8x128xf32>
    %48 = arith.truncf %30 : vector<8x128xf32> to vector<8x128xbf16>
    %c640 = arith.constant 640 : index
    %c0_26 = arith.constant 0 : index
    %49 = vector.load %arg4[%c640, %c0_26] : memref<1152x256xbf16, #tpu.memory_space<vmem>>, vector<128x128xbf16>
    %cst_27 = arith.constant dense<0.000000e+00> : vector<8x128xf32>
    %50 = tpu.matmul %48, %49, %cst_27 {dimension_numbers = #tpu.dot_dimension_numbers<[1], [0], [0], [1], [0, 0, 1, 1], [], []>} : vector<8x128xbf16>, vector<128x128xbf16>, vector<8x128xf32> -> vector<8x128xf32>
    %51 = arith.truncf %47 : vector<8x128xf32> to vector<8x128xbf16>
    %c768 = arith.constant 768 : index
    %c0_28 = arith.constant 0 : index
    %52 = vector.load %arg4[%c768, %c0_28] : memref<1152x256xbf16, #tpu.memory_space<vmem>>, vector<128x128xbf16>
    %cst_29 = arith.constant dense<0.000000e+00> : vector<8x128xf32>
    %53 = tpu.matmul %51, %52, %cst_29 {dimension_numbers = #tpu.dot_dimension_numbers<[1], [0], [0], [1], [0, 0, 1, 1], [], []>} : vector<8x128xbf16>, vector<128x128xbf16>, vector<8x128xf32> -> vector<8x128xf32>
    %54 = arith.addf %50, %53 : vector<8x128xf32>
    %c5 = arith.constant 5 : index
    %c0_30 = arith.constant 0 : index
    %55 = vector.load %arg5[%c5, %c0_30] : memref<8x256xf32, #tpu.memory_space<vmem>>, vector<1x128xf32>
    %56 = vector.broadcast %55 : vector<1x128xf32> to vector<8x128xf32>
    %57 = arith.addf %54, %56 : vector<8x128xf32>
    %cst_31 = arith.constant 0.000000e+00 : f32
    %58 = vector.broadcast %cst_31 : f32 to vector<8x128xf32>
    %59 = arith.maximumf %57, %58 : vector<8x128xf32>
    %60 = arith.truncf %59 : vector<8x128xf32> to vector<8x128xbf16>
    %c896 = arith.constant 896 : index
    %c0_32 = arith.constant 0 : index
    %61 = vector.load %arg4[%c896, %c0_32] : memref<1152x256xbf16, #tpu.memory_space<vmem>>, vector<128x128xbf16>
    %cst_33 = arith.constant dense<0.000000e+00> : vector<8x128xf32>
    %62 = tpu.matmul %60, %61, %cst_33 {dimension_numbers = #tpu.dot_dimension_numbers<[1], [0], [0], [1], [0, 0, 1, 1], [], []>} : vector<8x128xbf16>, vector<128x128xbf16>, vector<8x128xf32> -> vector<8x128xf32>
    %63 = arith.truncf %16 : vector<8x128xf32> to vector<8x128xbf16>
    %c1024 = arith.constant 1024 : index
    %c0_34 = arith.constant 0 : index
    %64 = vector.load %arg4[%c1024, %c0_34] : memref<1152x256xbf16, #tpu.memory_space<vmem>>, vector<128x128xbf16>
    %cst_35 = arith.constant dense<0.000000e+00> : vector<8x128xf32>
    %65 = tpu.matmul %63, %64, %cst_35 {dimension_numbers = #tpu.dot_dimension_numbers<[1], [0], [0], [1], [0, 0, 1, 1], [], []>} : vector<8x128xbf16>, vector<128x128xbf16>, vector<8x128xf32> -> vector<8x128xf32>
    %66 = arith.addf %62, %65 : vector<8x128xf32>
    %c6 = arith.constant 6 : index
    %c0_36 = arith.constant 0 : index
    %67 = vector.load %arg5[%c6, %c0_36] : memref<8x256xf32, #tpu.memory_space<vmem>>, vector<1x128xf32>
    %68 = vector.broadcast %67 : vector<1x128xf32> to vector<8x128xf32>
    %69 = arith.addf %66, %68 : vector<8x128xf32>
    %c0_37 = arith.constant 0 : index
    %c0_38 = arith.constant 0 : index
    %70 = vector.load %arg6[%c0_37, %c0_38] : memref<8x128xf32, #tpu.memory_space<vmem>>, vector<8x128xf32>
    tpu.vector_store %arg6[%c0_37, %c0_38], %69 {strides = array<i32>} : memref<8x128xf32, #tpu.memory_space<vmem>>, vector<8x128xf32>,
    return
  }
  func.func @transform_0(%arg0: i32) -> (i32, i32) {
    %c0_i32 = arith.constant 0 : i32
    %c0_i32_0 = arith.constant 0 : i32
    return %arg0, %c0_i32 : i32, i32
  }
  func.func @transform_1(%arg0: i32) -> (i32, i32) {
    %c0_i32 = arith.constant 0 : i32
    %c0_i32_0 = arith.constant 0 : i32
    return %arg0, %c0_i32 : i32, i32
  }
  func.func @transform_2(%arg0: i32) -> (i32, i32) {
    %c0_i32 = arith.constant 0 : i32
    %c0_i32_0 = arith.constant 0 : i32
    return %arg0, %c0_i32 : i32, i32
  }
  func.func @transform_3(%arg0: i32) -> (i32, i32) {
    %c0_i32 = arith.constant 0 : i32
    %c0_i32_0 = arith.constant 0 : i32
    %c0_i32_1 = arith.constant 0 : i32
    return %c0_i32, %c0_i32_0 : i32, i32
  }
  func.func @transform_4(%arg0: i32) -> (i32, i32) {
    %c0_i32 = arith.constant 0 : i32
    %c0_i32_0 = arith.constant 0 : i32
    %c0_i32_1 = arith.constant 0 : i32
    return %c0_i32, %c0_i32_0 : i32, i32
  }
  func.func @transform_5(%arg0: i32) -> (i32, i32) {
    %c0_i32 = arith.constant 0 : i32
    %c0_i32_0 = arith.constant 0 : i32
    return %arg0, %c0_i32 : i32, i32
  }
}

</mosaic_0001>

<llo_original>
// kernel: cnn_cvae_forward.1
$region0: #{cnn_cvae_forward.1}
  #allocation0 [shape = 'u32[]', space=smem, size = 0x4, offset = 0x4, fixed_abs, tag = 'smem constant byte address 0x4 - core index']
  #allocation1 [shape = 'u32[72,128]{1,0:T(1,128)}', space=vmem, size = 0x9000, scoped, tag = 'internal scratch']
  %s0 = inlined_call_operand.vmem [shape: f32[8,128], index: 0, kind: input, shape index: {}]
  %s1 = inlined_call_operand.vmem [shape: f32[8,128], index: 1, kind: input, shape index: {}]
  %s2 = inlined_call_operand.vmem [shape: f32[8,128], index: 2, kind: input, shape index: {}]
  %s3 = inlined_call_operand.hbm [shape: bf16[1152,256], index: 3, kind: input, shape index: {}]
  %s4 = inlined_call_operand.vmem [shape: f32[8,256], index: 4, kind: input, shape index: {}]
  %s5 = inlined_call_operand.vmem [shape: f32[8,128], index: 5, kind: output, shape index: {}]
  %s6 = sld [smem:[#allocation0]]
  $region34: #{cnn_cvae_forward.1} parent=0
    _
  %s8 = ssub.s32 1, %s6
  %s9 = scalar_select 0, %s8, %s6
  $region1: #{cnn_cvae_forward.1} parent=0
    #allocation2 [shape = 'u8[589824]{0}', space=vmem, size = 0x90000, scoped, tag = 'input window, operand 3, single buffered']
    #allocation3 [shape = 's32[1]{0}', space=sflag, size = 0x4, scoped, tag = 'scoped memory for cnn_cvae_forward.1']
    %10 = vsyncpa [#allocation3], 0
    // Predicated region
    $region2: #{cnn_cvae_forward.1} parent=1 // pred_check
      _
    $region3: #{cnn_cvae_forward.1} parent=1 // pred_check_branch
      %12 = sbr.rel (0) target = $region5
    $region4: #{cnn_cvae_forward.1} parent=1 // pred_region
      _
    $region5: #{cnn_cvae_forward.1} parent=1 // pred_fallthru
      _
    // Predicated region
    $region6: #{cnn_cvae_forward.1} parent=1 // pred_check
      _
    $region7: #{cnn_cvae_forward.1} parent=1 // pred_check_branch
      %14 = sbr.rel (0) target = $region9
    $region8: #{cnn_cvae_forward.1} parent=1 // pred_region
      _
    $region9: #{cnn_cvae_forward.1} parent=1 // pred_fallthru
      _
    // Predicated region
    $region10: #{cnn_cvae_forward.1} parent=1 // pred_check
      _
    $region11: #{cnn_cvae_forward.1} parent=1 // pred_check_branch
      %16 = sbr.rel (0) target = $region13
    $region12: #{cnn_cvae_forward.1} parent=1 // pred_region
      _
    $region13: #{cnn_cvae_forward.1} parent=1 // pred_fallthru
      _
    // Predicated region
    $region14: #{cnn_cvae_forward.1} parent=1 // pred_check
      _
    $region15: #{cnn_cvae_forward.1} parent=1 // pred_check_branch
      %18 = sbr.rel (0) target = $region17
    $region16: #{cnn_cvae_forward.1} parent=1 // pred_region
      %20 = vsyncadd [#allocation3], 0
      %s21 = sshll.u32 %s3, 4
      %s22 = int_to_ptr.hbm [resolvable:$true] %s21
      %s23 = sshll.u32 [#allocation2], 4
      %s24 = int_to_ptr.vmem [resolvable:$true] %s23
      %29 = dma.hbm_to_vmem [thread:$0]  %s22, 18432, %s24, [#allocation3], 128, 128, 8
    $region17: #{cnn_cvae_forward.1} parent=1 // pred_fallthru
      _
    // Predicated region
    $region18: #{cnn_cvae_forward.1} parent=1 // pred_check
      _
    $region19: #{cnn_cvae_forward.1} parent=1 // pred_check_branch
      %31 = sbr.rel (0) target = $region21
    $region20: #{cnn_cvae_forward.1} parent=1 // pred_region
      _
    $region21: #{cnn_cvae_forward.1} parent=1 // pred_fallthru
      _
    // Predicated region
    $region22: #{cnn_cvae_forward.1} parent=1 // pred_check
      _
    $region23: #{cnn_cvae_forward.1} parent=1 // pred_check_branch
      %33 = sbr.rel (0) target = $region25
    $region24: #{cnn_cvae_forward.1} parent=1 // pred_region
      %35 = dma.done [#allocation3], 18432
    $region25: #{cnn_cvae_forward.1} parent=1 // pred_fallthru
      _
    %v36 = vld [vmem:[%s0] sm:$0xff]
    %v37 = vpack.c.bf16 %v36, %v36
    %v38 = vld [vmem:[#allocation2] sm:$0xf]
    %v39 = vld [vmem:[#allocation2 + $0x8] sm:$0xf]
    %v40 = vld [vmem:[#allocation2 + $0x10] sm:$0xf]
    %v41 = vld [vmem:[#allocation2 + $0x18] sm:$0xf]
    %v42 = vld [vmem:[#allocation2 + $0x20] sm:$0xf]
    %v43 = vld [vmem:[#allocation2 + $0x28] sm:$0xf]
    %v44 = vld [vmem:[#allocation2 + $0x30] sm:$0xf]
    %v45 = vld [vmem:[#allocation2 + $0x38] sm:$0xf]
    %v46 = vld [vmem:[#allocation2 + $0x40] sm:$0xf]
    %v47 = vld [vmem:[#allocation2 + $0x48] sm:$0xf]
    %v48 = vld [vmem:[#allocation2 + $0x50] sm:$0xf]
    %v49 = vld [vmem:[#allocation2 + $0x58] sm:$0xf]
    %v50 = vld [vmem:[#allocation2 + $0x60] sm:$0xf]
    %v51 = vld [vmem:[#allocation2 + $0x68] sm:$0xf]
    %v52 = vld [vmem:[#allocation2 + $0x70] sm:$0xf]
    %v53 = vld [vmem:[#allocation2 + $0x78] sm:$0xf]
    %v54 = vld [vmem:[%s4] ss:$0 sm:$0xff]
    %v71 = vunpack.c.l.b16 %v38
    %v72 = vunpack.c.l.b16 %v39
    %v73 = vunpack.c.l.b16 %v40
    %v74 = vunpack.c.l.b16 %v41
    %v75 = vunpack.c.l.b16 %v42
    %v76 = vunpack.c.l.b16 %v43
    %v77 = vunpack.c.l.b16 %v44
    %v78 = vunpack.c.l.b16 %v45
    %v79 = vunpack.c.l.b16 %v46
    %v80 = vunpack.c.l.b16 %v47
    %v81 = vunpack.c.l.b16 %v48
    %v82 = vunpack.c.l.b16 %v49
    %v83 = vunpack.c.l.b16 %v50
    %v84 = vunpack.c.l.b16 %v51
    %v85 = vunpack.c.l.b16 %v52
    %v86 = vunpack.c.l.b16 %v53
    %v87 = vpack.c.b16 %v72, %v71
    %v88 = vpack.c.b16 %v74, %v73
    %v89 = vpack.c.b16 %v76, %v75
    %v90 = vpack.c.b16 %v78, %v77
    %v91 = vpack.c.b16 %v80, %v79
    %v92 = vpack.c.b16 %v82, %v81
    %v93 = vpack.c.b16 %v84, %v83
    %v94 = vpack.c.b16 %v86, %v85
    %103 = vmatpush.bf16.msra.mxu0 %v94
    %104 = vmatpush.bf16.msra.mxu0 %v93
    %105 = vmatpush.bf16.msra.mxu0 %v92
    %106 = vmatpush.bf16.msra.mxu0 %v91
    %107 = vmatpush.bf16.msra.mxu0 %v90
    %108 = vmatpush.bf16.msra.mxu0 %v89
    %109 = vmatpush.bf16.msra.mxu0 %v88
    %110 = vmatpush.bf16.msra.mxu0 %v87
    %111 = vmatmul.bf16.gmra.mxu0 %v37
    %v112 = vpop.f32.mrf.mxu0
    %v113 = vadd.f32 %v54, %v112
    %v114 = vpop.f32.mrf.mxu0
    %115 = vdwg.mxu0
    %v116 = vmax.f32 %v113, 0.0
    %v117 = vpack.c.bf16 %v116, %v116
    %v118 = vld [vmem:[#allocation2 + $0x80] sm:$0xf]
    %v119 = vld [vmem:[#allocation2 + $0x88] sm:$0xf]
    %v120 = vld [vmem:[#allocation2 + $0x90] sm:$0xf]
    %v121 = vld [vmem:[#allocation2 + $0x98] sm:$0xf]
    %v122 = vld [vmem:[#allocation2 + $0xa0] sm:$0xf]
    %v123 = vld [vmem:[#allocation2 + $0xa8] sm:$0xf]
    %v124 = vld [vmem:[#allocation2 + $0xb0] sm:$0xf]
    %v125 = vld [vmem:[#allocation2 + $0xb8] sm:$0xf]
    %v126 = vld [vmem:[#allocation2 + $0xc0] sm:$0xf]
    %v127 = vld [vmem:[#allocation2 + $0xc8] sm:$0xf]
    %v128 = vld [vmem:[#allocation2 + $0xd0] sm:$0xf]
    %v129 = vld [vmem:[#allocation2 + $0xd8] sm:$0xf]
    %v130 = vld [vmem:[#allocation2 + $0xe0] sm:$0xf]
    %v131 = vld [vmem:[#allocation2 + $0xe8] sm:$0xf]
    %v132 = vld [vmem:[#allocation2 + $0xf0] sm:$0xf]
    %v133 = vld [vmem:[#allocation2 + $0xf8] sm:$0xf]
    %v134 = vld [vmem:[%s4 + $0x1] ss:$0 sm:$0xff]
    %v151 = vunpack.c.l.b16 %v118
    %v152 = vunpack.c.l.b16 %v119
    %v153 = vunpack.c.l.b16 %v120
    %v154 = vunpack.c.l.b16 %v121
    %v155 = vunpack.c.l.b16 %v122
    %v156 = vunpack.c.l.b16 %v123
    %v157 = vunpack.c.l.b16 %v124
    %v158 = vunpack.c.l.b16 %v125
    %v159 = vunpack.c.l.b16 %v126
    %v160 = vunpack.c.l.b16 %v127
    %v161 = vunpack.c.l.b16 %v128
    %v162 = vunpack.c.l.b16 %v129
    %v163 = vunpack.c.l.b16 %v130
    %v164 = vunpack.c.l.b16 %v131
    %v165 = vunpack.c.l.b16 %v132
    %v166 = vunpack.c.l.b16 %v133
    %v167 = vpack.c.b16 %v152, %v151
    %v168 = vpack.c.b16 %v154, %v153
    %v169 = vpack.c.b16 %v156, %v155
    %v170 = vpack.c.b16 %v158, %v157
    %v171 = vpack.c.b16 %v160, %v159
    %v172 = vpack.c.b16 %v162, %v161
    %v173 = vpack.c.b16 %v164, %v163
    %v174 = vpack.c.b16 %v166, %v165
    %183 = vmatpush.bf16.msra.mxu0 %v174
    %184 = vmatpush.bf16.msra.mxu0 %v173
    %185 = vmatpush.bf16.msra.mxu0 %v172
    %186 = vmatpush.bf16.msra.mxu0 %v171
    %187 = vmatpush.bf16.msra.mxu0 %v170
    %188 = vmatpush.bf16.msra.mxu0 %v169
    %189 = vmatpush.bf16.msra.mxu0 %v168
    %190 = vmatpush.bf16.msra.mxu0 %v167
    %191 = vmatmul.bf16.gmra.mxu0 %v117
    %v192 = vpop.f32.mrf.mxu0
    %v193 = vadd.f32 %v134, %v192
    %v194 = vpop.f32.mrf.mxu0
    %195 = vdwg.mxu0
    %v196 = vmax.f32 %v193, 0.0
    %v197 = vpack.c.bf16 %v196, %v196
    %v198 = vld [vmem:[#allocation2 + $0x100] sm:$0xff]
    %v199 = vld [vmem:[#allocation2 + $0x108] sm:$0xff]
    %v200 = vld [vmem:[#allocation2 + $0x110] sm:$0xff]
    %v201 = vld [vmem:[#allocation2 + $0x118] sm:$0xff]
    %v202 = vld [vmem:[#allocation2 + $0x120] sm:$0xff]
    %v203 = vld [vmem:[#allocation2 + $0x128] sm:$0xff]
    %v204 = vld [vmem:[#allocation2 + $0x130] sm:$0xff]
    %v205 = vld [vmem:[#allocation2 + $0x138] sm:$0xff]
    %v206 = vld [vmem:[#allocation2 + $0x140] sm:$0xff]
    %v207 = vld [vmem:[#allocation2 + $0x148] sm:$0xff]
    %v208 = vld [vmem:[#allocation2 + $0x150] sm:$0xff]
    %v209 = vld [vmem:[#allocation2 + $0x158] sm:$0xff]
    %v210 = vld [vmem:[#allocation2 + $0x160] sm:$0xff]
    %v211 = vld [vmem:[#allocation2 + $0x168] sm:$0xff]
    %v212 = vld [vmem:[#allocation2 + $0x170] sm:$0xff]
    %v213 = vld [vmem:[#allocation2 + $0x178] sm:$0xff]
    %s214 = scalar_lea.vmem %s4, 2
    %v215 = vld [vmem:[%s214] ss:$8 sm:$0x3]
    %v217 = vperm.slane %v215, 0
    %v218 = vperm.slane %v215, 1
    %v237 = vunpack.c.l.b16 %v198
    %v238 = vunpack.c.h.b16 %v198
    %v239 = vunpack.c.l.b16 %v199
    %v240 = vunpack.c.h.b16 %v199
    %v241 = vunpack.c.l.b16 %v200
    %v242 = vunpack.c.h.b16 %v200
    %v243 = vunpack.c.l.b16 %v201
    %v244 = vunpack.c.h.b16 %v201
    %v245 = vunpack.c.l.b16 %v202
    %v246 = vunpack.c.h.b16 %v202
    %v247 = vunpack.c.l.b16 %v203
    %v248 = vunpack.c.h.b16 %v203
    %v249 = vunpack.c.l.b16 %v204
    %v250 = vunpack.c.h.b16 %v204
    %v251 = vunpack.c.l.b16 %v205
    %v252 = vunpack.c.h.b16 %v205
    %v253 = vunpack.c.l.b16 %v206
    %v254 = vunpack.c.h.b16 %v206
    %v255 = vunpack.c.l.b16 %v207
    %v256 = vunpack.c.h.b16 %v207
    %v257 = vunpack.c.l.b16 %v208
    %v258 = vunpack.c.h.b16 %v208
    %v259 = vunpack.c.l.b16 %v209
    %v260 = vunpack.c.h.b16 %v209
    %v261 = vunpack.c.l.b16 %v210
    %v262 = vunpack.c.h.b16 %v210
    %v263 = vunpack.c.l.b16 %v211
    %v264 = vunpack.c.h.b16 %v211
    %v265 = vunpack.c.l.b16 %v212
    %v266 = vunpack.c.h.b16 %v212
    %v267 = vunpack.c.l.b16 %v213
    %v268 = vunpack.c.h.b16 %v213
    %v269 = vpack.c.b16 %v239, %v237
    %v270 = vpack.c.b16 %v240, %v238
    %v271 = vpack.c.b16 %v243, %v241
    %v272 = vpack.c.b16 %v244, %v242
    %v273 = vpack.c.b16 %v247, %v245
    %v274 = vpack.c.b16 %v248, %v246
    %v275 = vpack.c.b16 %v251, %v249
    %v276 = vpack.c.b16 %v252, %v250
    %v277 = vpack.c.b16 %v255, %v253
    %v278 = vpack.c.b16 %v256, %v254
    %v279 = vpack.c.b16 %v259, %v257
    %v280 = vpack.c.b16 %v260, %v258
    %v281 = vpack.c.b16 %v263, %v261
    %v282 = vpack.c.b16 %v264, %v262
    %v283 = vpack.c.b16 %v267, %v265
    %v284 = vpack.c.b16 %v268, %v266
    %301 = vmatpush.bf16.msra.mxu0 %v283
    %302 = vmatpush.bf16.msra.mxu0 %v281
    %303 = vmatpush.bf16.msra.mxu0 %v279
    %304 = vmatpush.bf16.msra.mxu0 %v277
    %305 = vmatpush.bf16.msra.mxu0 %v275
    %306 = vmatpush.bf16.msra.mxu0 %v273
    %307 = vmatpush.bf16.msra.mxu0 %v271
    %308 = vmatpush.bf16.msra.mxu0 %v269
    %309 = vmatmul.bf16.gmra.mxu0 %v197
    %v310 = vpop.f32.mrf.mxu0
    %v311 = vadd.f32 %v217, %v310
    %v312 = vpop.f32.mrf.mxu0
    %313 = vdwg.mxu0
    %314 = vmatpush.bf16.msra.mxu0 %v284
    %315 = vmatpush.bf16.msra.mxu0 %v282
    %316 = vmatpush.bf16.msra.mxu0 %v280
    %317 = vmatpush.bf16.msra.mxu0 %v278
    %318 = vmatpush.bf16.msra.mxu0 %v276
    %319 = vmatpush.bf16.msra.mxu0 %v274
    %320 = vmatpush.bf16.msra.mxu0 %v272
    %321 = vmatpush.bf16.msra.mxu0 %v270
    %322 = vmatmul.bf16.gmra.mxu0 %v197
    %v323 = vpop.f32.mrf.mxu0
    %v324 = vadd.f32 %v218, %v323
    %v325 = vpop.f32.mrf.mxu0
    %326 = vdwg.mxu0
    %v327 = vld [vmem:[%s2] sm:$0xff]
    %v328 = vmul.f32 %v324, 0.5
    %v329 = vmul.f32 %v328, 1.442695
    %v330 = vpow.pop %v329
    %v331 = vmul.f32 %v327, %v330
    %v332 = vadd.f32 %v311, %v331
    %v333 = vld [vmem:[%s1] sm:$0xff]
    %v334 = vpack.c.bf16 %v333, %v333
    %v335 = vld [vmem:[#allocation2 + $0x180] sm:$0xf]
    %v336 = vld [vmem:[#allocation2 + $0x188] sm:$0xf]
    %v337 = vld [vmem:[#allocation2 + $0x190] sm:$0xf]
    %v338 = vld [vmem:[#allocation2 + $0x198] sm:$0xf]
    %v339 = vld [vmem:[#allocation2 + $0x1a0] sm:$0xf]
    %v340 = vld [vmem:[#allocation2 + $0x1a8] sm:$0xf]
    %v341 = vld [vmem:[#allocation2 + $0x1b0] sm:$0xf]
    %v342 = vld [vmem:[#allocation2 + $0x1b8] sm:$0xf]
    %v343 = vld [vmem:[#allocation2 + $0x1c0] sm:$0xf]
    %v344 = vld [vmem:[#allocation2 + $0x1c8] sm:$0xf]
    %v345 = vld [vmem:[#allocation2 + $0x1d0] sm:$0xf]
    %v346 = vld [vmem:[#allocation2 + $0x1d8] sm:$0xf]
    %v347 = vld [vmem:[#allocation2 + $0x1e0] sm:$0xf]
    %v348 = vld [vmem:[#allocation2 + $0x1e8] sm:$0xf]
    %v349 = vld [vmem:[#allocation2 + $0x1f0] sm:$0xf]
    %v350 = vld [vmem:[#allocation2 + $0x1f8] sm:$0xf]
    %v351 = vld [vmem:[%s4 + $0x3] ss:$0 sm:$0xff]
    %v368 = vunpack.c.l.b16 %v335
    %v369 = vunpack.c.l.b16 %v336
    %v370 = vunpack.c.l.b16 %v337
    %v371 = vunpack.c.l.b16 %v338
    %v372 = vunpack.c.l.b16 %v339
    %v373 = vunpack.c.l.b16 %v340
    %v374 = vunpack.c.l.b16 %v341
    %v375 = vunpack.c.l.b16 %v342
    %v376 = vunpack.c.l.b16 %v343
    %v377 = vunpack.c.l.b16 %v344
    %v378 = vunpack.c.l.b16 %v345
    %v379 = vunpack.c.l.b16 %v346
    %v380 = vunpack.c.l.b16 %v347
    %v381 = vunpack.c.l.b16 %v348
    %v382 = vunpack.c.l.b16 %v349
    %v383 = vunpack.c.l.b16 %v350
    %v384 = vpack.c.b16 %v369, %v368
    %v385 = vpack.c.b16 %v371, %v370
    %v386 = vpack.c.b16 %v373, %v372
    %v387 = vpack.c.b16 %v375, %v374
    %v388 = vpack.c.b16 %v377, %v376
    %v389 = vpack.c.b16 %v379, %v378
    %v390 = vpack.c.b16 %v381, %v380
    %v391 = vpack.c.b16 %v383, %v382
    %400 = vmatpush.bf16.msra.mxu0 %v391
    %401 = vmatpush.bf16.msra.mxu0 %v390
    %402 = vmatpush.bf16.msra.mxu0 %v389
    %403 = vmatpush.bf16.msra.mxu0 %v388
    %404 = vmatpush.bf16.msra.mxu0 %v387
    %405 = vmatpush.bf16.msra.mxu0 %v386
    %406 = vmatpush.bf16.msra.mxu0 %v385
    %407 = vmatpush.bf16.msra.mxu0 %v384
    %408 = vmatmul.bf16.gmra.mxu0 %v334
    %v409 = vpop.f32.mrf.mxu0
    %v410 = vadd.f32 %v351, %v409
    %v411 = vpop.f32.mrf.mxu0
    %412 = vdwg.mxu0
    %v413 = vmax.f32 %v410, 0.0
    %v414 = vpack.c.bf16 %v413, %v413
    %v415 = vld [vmem:[#allocation2 + $0x200] sm:$0xf]
    %v416 = vld [vmem:[#allocation2 + $0x208] sm:$0xf]
    %v417 = vld [vmem:[#allocation2 + $0x210] sm:$0xf]
    %v418 = vld [vmem:[#allocation2 + $0x218] sm:$0xf]
    %v419 = vld [vmem:[#allocation2 + $0x220] sm:$0xf]
    %v420 = vld [vmem:[#allocation2 + $0x228] sm:$0xf]
    %v421 = vld [vmem:[#allocation2 + $0x230] sm:$0xf]
    %v422 = vld [vmem:[#allocation2 + $0x238] sm:$0xf]
    %v423 = vld [vmem:[#allocation2 + $0x240] sm:$0xf]
    %v424 = vld [vmem:[#allocation2 + $0x248] sm:$0xf]
    %v425 = vld [vmem:[#allocation2 + $0x250] sm:$0xf]
    %v426 = vld [vmem:[#allocation2 + $0x258] sm:$0xf]
    %v427 = vld [vmem:[#allocation2 + $0x260] sm:$0xf]
    %v428 = vld [vmem:[#allocation2 + $0x268] sm:$0xf]
    %v429 = vld [vmem:[#allocation2 + $0x270] sm:$0xf]
    %v430 = vld [vmem:[#allocation2 + $0x278] sm:$0xf]
    %v431 = vld [vmem:[%s4 + $0x4] ss:$0 sm:$0xff]
    %v448 = vunpack.c.l.b16 %v415
    %v449 = vunpack.c.l.b16 %v416
    %v450 = vunpack.c.l.b16 %v417
    %v451 = vunpack.c.l.b16 %v418
    %v452 = vunpack.c.l.b16 %v419
    %v453 = vunpack.c.l.b16 %v420
    %v454 = vunpack.c.l.b16 %v421
    %v455 = vunpack.c.l.b16 %v422
    %v456 = vunpack.c.l.b16 %v423
    %v457 = vunpack.c.l.b16 %v424
    %v458 = vunpack.c.l.b16 %v425
    %v459 = vunpack.c.l.b16 %v426
    %v460 = vunpack.c.l.b16 %v427
    %v461 = vunpack.c.l.b16 %v428
    %v462 = vunpack.c.l.b16 %v429
    %v463 = vunpack.c.l.b16 %v430
    %v464 = vpack.c.b16 %v449, %v448
    %v465 = vpack.c.b16 %v451, %v450
    %v466 = vpack.c.b16 %v453, %v452
    %v467 = vpack.c.b16 %v455, %v454
    %v468 = vpack.c.b16 %v457, %v456
    %v469 = vpack.c.b16 %v459, %v458
    %v470 = vpack.c.b16 %v461, %v460
    %v471 = vpack.c.b16 %v463, %v462
    %480 = vmatpush.bf16.msra.mxu0 %v471
    %481 = vmatpush.bf16.msra.mxu0 %v470
    %482 = vmatpush.bf16.msra.mxu0 %v469
    %483 = vmatpush.bf16.msra.mxu0 %v468
    %484 = vmatpush.bf16.msra.mxu0 %v467
    %485 = vmatpush.bf16.msra.mxu0 %v466
    %486 = vmatpush.bf16.msra.mxu0 %v465
    %487 = vmatpush.bf16.msra.mxu0 %v464
    %488 = vmatmul.bf16.gmra.mxu0 %v414
    %v489 = vpop.f32.mrf.mxu0
    %v490 = vadd.f32 %v431, %v489
    %v491 = vpop.f32.mrf.mxu0
    %492 = vdwg.mxu0
    %v493 = vmax.f32 %v490, 0.0
    %v494 = vpack.c.bf16 %v332, %v332
    %v495 = vld [vmem:[#allocation2 + $0x280] sm:$0xf]
    %v496 = vld [vmem:[#allocation2 + $0x288] sm:$0xf]
    %v497 = vld [vmem:[#allocation2 + $0x290] sm:$0xf]
    %v498 = vld [vmem:[#allocation2 + $0x298] sm:$0xf]
    %v499 = vld [vmem:[#allocation2 + $0x2a0] sm:$0xf]
    %v500 = vld [vmem:[#allocation2 + $0x2a8] sm:$0xf]
    %v501 = vld [vmem:[#allocation2 + $0x2b0] sm:$0xf]
    %v502 = vld [vmem:[#allocation2 + $0x2b8] sm:$0xf]
    %v503 = vld [vmem:[#allocation2 + $0x2c0] sm:$0xf]
    %v504 = vld [vmem:[#allocation2 + $0x2c8] sm:$0xf]
    %v505 = vld [vmem:[#allocation2 + $0x2d0] sm:$0xf]
    %v506 = vld [vmem:[#allocation2 + $0x2d8] sm:$0xf]
    %v507 = vld [vmem:[#allocation2 + $0x2e0] sm:$0xf]
    %v508 = vld [vmem:[#allocation2 + $0x2e8] sm:$0xf]
    %v509 = vld [vmem:[#allocation2 + $0x2f0] sm:$0xf]
    %v510 = vld [vmem:[#allocation2 + $0x2f8] sm:$0xf]
    %v511 = vpack.c.bf16 %v493, %v493
    %v512 = vld [vmem:[#allocation2 + $0x300] sm:$0xf]
    %v513 = vld [vmem:[#allocation2 + $0x308] sm:$0xf]
    %v514 = vld [vmem:[#allocation2 + $0x310] sm:$0xf]
    %v515 = vld [vmem:[#allocation2 + $0x318] sm:$0xf]
    %v516 = vld [vmem:[#allocation2 + $0x320] sm:$0xf]
    %v517 = vld [vmem:[#allocation2 + $0x328] sm:$0xf]
    %v518 = vld [vmem:[#allocation2 + $0x330] sm:$0xf]
    %v519 = vld [vmem:[#allocation2 + $0x338] sm:$0xf]
    %v520 = vld [vmem:[#allocation2 + $0x340] sm:$0xf]
    %v521 = vld [vmem:[#allocation2 + $0x348] sm:$0xf]
    %v522 = vld [vmem:[#allocation2 + $0x350] sm:$0xf]
    %v523 = vld [vmem:[#allocation2 + $0x358] sm:$0xf]
    %v524 = vld [vmem:[#allocation2 + $0x360] sm:$0xf]
    %v525 = vld [vmem:[#allocation2 + $0x368] sm:$0xf]
    %v526 = vld [vmem:[#allocation2 + $0x370] sm:$0xf]
    %v527 = vld [vmem:[#allocation2 + $0x378] sm:$0xf]
    %v544 = vunpack.c.l.b16 %v512
    %v545 = vunpack.c.l.b16 %v513
    %v546 = vunpack.c.l.b16 %v514
    %v547 = vunpack.c.l.b16 %v515
    %v548 = vunpack.c.l.b16 %v516
    %v549 = vunpack.c.l.b16 %v517
    %v550 = vunpack.c.l.b16 %v518
    %v551 = vunpack.c.l.b16 %v519
    %v552 = vunpack.c.l.b16 %v520
    %v553 = vunpack.c.l.b16 %v521
    %v554 = vunpack.c.l.b16 %v522
    %v555 = vunpack.c.l.b16 %v523
    %v556 = vunpack.c.l.b16 %v524
    %v557 = vunpack.c.l.b16 %v525
    %v558 = vunpack.c.l.b16 %v526
    %v559 = vunpack.c.l.b16 %v527
    %v560 = vpack.c.b16 %v545, %v544
    %v561 = vpack.c.b16 %v547, %v546
    %v562 = vpack.c.b16 %v549, %v548
    %v563 = vpack.c.b16 %v551, %v550
    %v564 = vpack.c.b16 %v553, %v552
    %v565 = vpack.c.b16 %v555, %v554
    %v566 = vpack.c.b16 %v557, %v556
    %v567 = vpack.c.b16 %v559, %v558
    %576 = vmatpush.bf16.msra.mxu0 %v567
    %577 = vmatpush.bf16.msra.mxu0 %v566
    %578 = vmatpush.bf16.msra.mxu0 %v565
    %579 = vmatpush.bf16.msra.mxu0 %v564
    %580 = vmatpush.bf16.msra.mxu0 %v563
    %581 = vmatpush.bf16.msra.mxu0 %v562
    %582 = vmatpush.bf16.msra.mxu0 %v561
    %583 = vmatpush.bf16.msra.mxu0 %v560
    %584 = vmatmul.bf16.gmra.mxu0 %v511
    %v585 = vpop.f32.mrf.mxu0
    %v586 = vadd.f32 0.0, %v585
    %v587 = vpop.f32.mrf.mxu0
    %588 = vdwg.mxu0
    %v605 = vunpack.c.l.b16 %v495
    %v606 = vunpack.c.l.b16 %v496
    %v607 = vunpack.c.l.b16 %v497
    %v608 = vunpack.c.l.b16 %v498
    %v609 = vunpack.c.l.b16 %v499
    %v610 = vunpack.c.l.b16 %v500
    %v611 = vunpack.c.l.b16 %v501
    %v612 = vunpack.c.l.b16 %v502
    %v613 = vunpack.c.l.b16 %v503
    %v614 = vunpack.c.l.b16 %v504
    %v615 = vunpack.c.l.b16 %v505
    %v616 = vunpack.c.l.b16 %v506
    %v617 = vunpack.c.l.b16 %v507
    %v618 = vunpack.c.l.b16 %v508
    %v619 = vunpack.c.l.b16 %v509
    %v620 = vunpack.c.l.b16 %v510
    %v621 = vpack.c.b16 %v606, %v605
    %v622 = vpack.c.b16 %v608, %v607
    %v623 = vpack.c.b16 %v610, %v609
    %v624 = vpack.c.b16 %v612, %v611
    %v625 = vpack.c.b16 %v614, %v613
    %v626 = vpack.c.b16 %v616, %v615
    %v627 = vpack.c.b16 %v618, %v617
    %v628 = vpack.c.b16 %v620, %v619
    %637 = vmatpush.bf16.msra.mxu0 %v628
    %638 = vmatpush.bf16.msra.mxu0 %v627
    %639 = vmatpush.bf16.msra.mxu0 %v626
    %640 = vmatpush.bf16.msra.mxu0 %v625
    %641 = vmatpush.bf16.msra.mxu0 %v624
    %642 = vmatpush.bf16.msra.mxu0 %v623
    %643 = vmatpush.bf16.msra.mxu0 %v622
    %644 = vmatpush.bf16.msra.mxu0 %v621
    %645 = vmatmul.bf16.gmra.mxu0 %v494
    %v646 = vpop.f32.mrf.mxu0
    %v647 = vadd.f32 %v586, %v646
    %v648 = vpop.f32.mrf.mxu0
    %649 = vdwg.mxu0
    %v650 = vld [vmem:[%s4 + $0x5] ss:$0 sm:$0xff]
    %v651 = vadd.f32 %v647, %v650
    %v652 = vmax.f32 %v651, 0.0
    %v653 = vpack.c.bf16 %v652, %v652
    %v654 = vld [vmem:[#allocation2 + $0x380] sm:$0xf]
    %v655 = vld [vmem:[#allocation2 + $0x388] sm:$0xf]
    %v656 = vld [vmem:[#allocation2 + $0x390] sm:$0xf]
    %v657 = vld [vmem:[#allocation2 + $0x398] sm:$0xf]
    %v658 = vld [vmem:[#allocation2 + $0x3a0] sm:$0xf]
    %v659 = vld [vmem:[#allocation2 + $0x3a8] sm:$0xf]
    %v660 = vld [vmem:[#allocation2 + $0x3b0] sm:$0xf]
    %v661 = vld [vmem:[#allocation2 + $0x3b8] sm:$0xf]
    %v662 = vld [vmem:[#allocation2 + $0x3c0] sm:$0xf]
    %v663 = vld [vmem:[#allocation2 + $0x3c8] sm:$0xf]
    %v664 = vld [vmem:[#allocation2 + $0x3d0] sm:$0xf]
    %v665 = vld [vmem:[#allocation2 + $0x3d8] sm:$0xf]
    %v666 = vld [vmem:[#allocation2 + $0x3e0] sm:$0xf]
    %v667 = vld [vmem:[#allocation2 + $0x3e8] sm:$0xf]
    %v668 = vld [vmem:[#allocation2 + $0x3f0] sm:$0xf]
    %v669 = vld [vmem:[#allocation2 + $0x3f8] sm:$0xf]
    %v670 = vld [vmem:[#allocation2 + $0x400] sm:$0xf]
    %v671 = vld [vmem:[#allocation2 + $0x408] sm:$0xf]
    %v672 = vld [vmem:[#allocation2 + $0x410] sm:$0xf]
    %v673 = vld [vmem:[#allocation2 + $0x418] sm:$0xf]
    %v674 = vld [vmem:[#allocation2 + $0x420] sm:$0xf]
    %v675 = vld [vmem:[#allocation2 + $0x428] sm:$0xf]
    %v676 = vld [vmem:[#allocation2 + $0x430] sm:$0xf]
    %v677 = vld [vmem:[#allocation2 + $0x438] sm:$0xf]
    %v678 = vld [vmem:[#allocation2 + $0x440] sm:$0xf]
    %v679 = vld [vmem:[#allocation2 + $0x448] sm:$0xf]
    %v680 = vld [vmem:[#allocation2 + $0x450] sm:$0xf]
    %v681 = vld [vmem:[#allocation2 + $0x458] sm:$0xf]
    %v682 = vld [vmem:[#allocation2 + $0x460] sm:$0xf]
    %v683 = vld [vmem:[#allocation2 + $0x468] sm:$0xf]
    %v684 = vld [vmem:[#allocation2 + $0x470] sm:$0xf]
    %v685 = vld [vmem:[#allocation2 + $0x478] sm:$0xf]
    %v702 = vunpack.c.l.b16 %v670
    %v703 = vunpack.c.l.b16 %v671
    %v704 = vunpack.c.l.b16 %v672
    %v705 = vunpack.c.l.b16 %v673
    %v706 = vunpack.c.l.b16 %v674
    %v707 = vunpack.c.l.b16 %v675
    %v708 = vunpack.c.l.b16 %v676
    %v709 = vunpack.c.l.b16 %v677
    %v710 = vunpack.c.l.b16 %v678
    %v711 = vunpack.c.l.b16 %v679
    %v712 = vunpack.c.l.b16 %v680
    %v713 = vunpack.c.l.b16 %v681
    %v714 = vunpack.c.l.b16 %v682
    %v715 = vunpack.c.l.b16 %v683
    %v716 = vunpack.c.l.b16 %v684
    %v717 = vunpack.c.l.b16 %v685
    %v718 = vpack.c.b16 %v703, %v702
    %v719 = vpack.c.b16 %v705, %v704
    %v720 = vpack.c.b16 %v707, %v706
    %v721 = vpack.c.b16 %v709, %v708
    %v722 = vpack.c.b16 %v711, %v710
    %v723 = vpack.c.b16 %v713, %v712
    %v724 = vpack.c.b16 %v715, %v714
    %v725 = vpack.c.b16 %v717, %v716
    %734 = vmatpush.bf16.msra.mxu0 %v725
    %735 = vmatpush.bf16.msra.mxu0 %v724
    %736 = vmatpush.bf16.msra.mxu0 %v723
    %737 = vmatpush.bf16.msra.mxu0 %v722
    %738 = vmatpush.bf16.msra.mxu0 %v721
    %739 = vmatpush.bf16.msra.mxu0 %v720
    %740 = vmatpush.bf16.msra.mxu0 %v719
    %741 = vmatpush.bf16.msra.mxu0 %v718
    %742 = vmatmul.bf16.gmra.mxu0 %v197
    %v743 = vpop.f32.mrf.mxu0
    %v744 = vadd.f32 0.0, %v743
    %v745 = vpop.f32.mrf.mxu0
    %746 = vdwg.mxu0
    %v763 = vunpack.c.l.b16 %v654
    %v764 = vunpack.c.l.b16 %v655
    %v765 = vunpack.c.l.b16 %v656
    %v766 = vunpack.c.l.b16 %v657
    %v767 = vunpack.c.l.b16 %v658
    %v768 = vunpack.c.l.b16 %v659
    %v769 = vunpack.c.l.b16 %v660
    %v770 = vunpack.c.l.b16 %v661
    %v771 = vunpack.c.l.b16 %v662
    %v772 = vunpack.c.l.b16 %v663
    %v773 = vunpack.c.l.b16 %v664
    %v774 = vunpack.c.l.b16 %v665
    %v775 = vunpack.c.l.b16 %v666
    %v776 = vunpack.c.l.b16 %v667
    %v777 = vunpack.c.l.b16 %v668
    %v778 = vunpack.c.l.b16 %v669
    %v779 = vpack.c.b16 %v764, %v763
    %v780 = vpack.c.b16 %v766, %v765
    %v781 = vpack.c.b16 %v768, %v767
    %v782 = vpack.c.b16 %v770, %v769
    %v783 = vpack.c.b16 %v772, %v771
    %v784 = vpack.c.b16 %v774, %v773
    %v785 = vpack.c.b16 %v776, %v775
    %v786 = vpack.c.b16 %v778, %v777
    %795 = vmatpush.bf16.msra.mxu0 %v786
    %796 = vmatpush.bf16.msra.mxu0 %v785
    %797 = vmatpush.bf16.msra.mxu0 %v784
    %798 = vmatpush.bf16.msra.mxu0 %v783
    %799 = vmatpush.bf16.msra.mxu0 %v782
    %800 = vmatpush.bf16.msra.mxu0 %v781
    %801 = vmatpush.bf16.msra.mxu0 %v780
    %802 = vmatpush.bf16.msra.mxu0 %v779
    %803 = vmatmul.bf16.gmra.mxu0 %v653
    %v804 = vpop.f32.mrf.mxu0
    %v805 = vadd.f32 %v744, %v804
    %v806 = vpop.f32.mrf.mxu0
    %807 = vdwg.mxu0
    %v808 = vld [vmem:[%s4 + $0x6] ss:$0 sm:$0xff]
    %v809 = vadd.f32 %v805, %v808
    %810 = vst [vmem:[%s5] sm:$0xff] %v809
    // Predicated region
    $region26: #{cnn_cvae_forward.1} parent=1 // pred_check
      _
    $region27: #{cnn_cvae_forward.1} parent=1 // pred_check_branch
      %812 = sbr.rel (0) target = $region29
    $region28: #{cnn_cvae_forward.1} parent=1 // pred_region
      _
    $region29: #{cnn_cvae_forward.1} parent=1 // pred_fallthru
      _
    // Predicated region
    $region30: #{cnn_cvae_forward.1} parent=1 // pred_check
      _
    $region31: #{cnn_cvae_forward.1} parent=1 // pred_check_branch
      %814 = sbr.rel (0) target = $region33
    $region32: #{cnn_cvae_forward.1} parent=1 // pred_region
      _
    $region33: #{cnn_cvae_forward.1} parent=1 // pred_fallthru
      _
    %815 = vsyncpa [#allocation3], 1

</llo_original>
